<compile_context>
chip_gen: v7x
topology: tpu7x:2x2x1
jax: 0.10.0
libtpu: 0.0.40
codegen_flags: <defaults>
</compile_context>

<pallas_src>
import jax
import jax.numpy as jnp
from jax.experimental import pallas as pl
from jax.experimental.pallas import tpu as pltpu


# ---------------------------------------------------------------------------
# Glue: deterministic construction of the Slaney-normalized (HTK-scale) mel
# filter bank, equivalent to torchaudio.functional.melscale_fbanks(..., norm='slaney').
# (Buffer initialization only -- not part of the forward pass.)
# ---------------------------------------------------------------------------
def _hz_to_mel(freq):
    return 2595.0 * jnp.log10(1.0 + freq / 700.0)


def _mel_to_hz(mel):
    return 700.0 * (jnp.power(10.0, mel / 2595.0) - 1.0)


def melscale_fbanks(n_freqs, f_min, f_max, n_mels, sample_rate):
    all_freqs = jnp.linspace(0.0, sample_rate // 2, n_freqs)

    m_min = _hz_to_mel(jnp.asarray(f_min, jnp.float32))
    m_max = _hz_to_mel(jnp.asarray(f_max, jnp.float32))
    m_pts = jnp.linspace(m_min, m_max, n_mels + 2)
    f_pts = _mel_to_hz(m_pts)

    # triangular filters
    f_diff = f_pts[1:] - f_pts[:-1]                         # (n_mels + 1,)
    slopes = f_pts[None, :] - all_freqs[:, None]            # (n_freqs, n_mels + 2)
    down = -slopes[:, :-2] / f_diff[:-1]                    # (n_freqs, n_mels)
    up = slopes[:, 2:] / f_diff[1:]                         # (n_freqs, n_mels)
    fb = jnp.maximum(jnp.zeros(1), jnp.minimum(down, up))   # (n_freqs, n_mels)

    # slaney normalization
    enorm = 2.0 / (f_pts[2 : n_mels + 2] - f_pts[:n_mels])
    fb = fb * enorm[None, :]
    return fb                                               # (n_freqs, n_mels)


# ---------------------------------------------------------------------------
# Kernel 1 (runs once): w[f, m] = base_fb[f, m] * softplus(logit[f, m])
# Numerically-stable softplus: max(x, 0) + log1p(exp(-|x|))  (no overflow for large x).
# ---------------------------------------------------------------------------
def weight_prep_kernel(fb_ref, logit_ref, w_ref):
    x = logit_ref[...]
    softplus = jnp.maximum(x, 0.0) + jnp.log1p(jnp.exp(-jnp.abs(x)))
    w_ref[...] = fb_ref[...] * softplus


# ---------------------------------------------------------------------------
# Kernel 2 (tiled over time): out[t, m] = sum_f spec[t, f] * w[f, m]
# Weights already in [K=F, N=M] layout -> pure MXU matmul, no per-step transpose
# and no per-step softplus recompute.
# ---------------------------------------------------------------------------
def mel_matmul_kernel(spec_ref, w_ref, out_ref):
    out_ref[...] = jnp.dot(
        spec_ref[...], w_ref[...], preferred_element_type=jnp.float32
    ).astype(out_ref.dtype)


def _round_up(x, m):
    return ((x + m - 1) // m) * m


def learnable_mel_filter(spectrogram, base_fb, logit_weights, *, t_tile=256):
    """spectrogram: (T, F); base_fb, logit_weights: (M, F) -- returns (T, M)."""
    T, F = spectrogram.shape
    M, F2 = base_fb.shape
    assert F == F2 and logit_weights.shape == (M, F)

    # One-time layout change to contraction layout (F, M); tiny wrapper-side op.
    fb_fm = jnp.transpose(base_fb).astype(jnp.float32)           # (F, M)
    logit_fm = jnp.transpose(logit_weights).astype(jnp.float32)  # (F, M)

    # Hoisted, grid-invariant weight prep (single Pallas invocation, whole arrays in VMEM).
    w_fm = pl.pallas_call(
        weight_prep_kernel,
        out_shape=jax.ShapeDtypeStruct((F, M), jnp.float32),
    )(fb_fm, logit_fm)

    # Choose a large time tile (multiple of 8), minimizing padding waste for ragged T.
    num_tiles = pl.cdiv(T, t_tile)
    tile = _round_up(pl.cdiv(T, num_tiles), 8)
    T_pad = tile * num_tiles

    spec = spectrogram
    if T_pad != T:
        spec = jnp.pad(spectrogram, ((0, T_pad - T), (0, 0)))

    out = pl.pallas_call(
        mel_matmul_kernel,
        out_shape=jax.ShapeDtypeStruct((T_pad, M), spectrogram.dtype),
        grid_spec=pltpu.PrefetchScalarGridSpec(
            num_scalar_prefetch=0,
            grid=(num_tiles,),
            in_specs=[
                pl.BlockSpec((tile, F), lambda i: (i, 0)),  # spectrogram time tile
                pl.BlockSpec((F, M), lambda i: (0, 0)),     # weights, resident across grid
            ],
            out_specs=pl.BlockSpec((tile, M), lambda i: (i, 0)),
        ),
        compiler_params=pltpu.CompilerParams(
            dimension_semantics=("parallel",),
        ),
    )(spec, w_fm)

    if T_pad != T:
        out = out[:T]
    return out


# Pure-JAX reference for verification.
def reference(spectrogram, base_fb, logit_weights):
    weights = base_fb * jax.nn.softplus(logit_weights)
    return jnp.einsum("tf,mf->tm", spectrogram, weights)


if __name__ == "__main__":
    # Module hyperparameters (small, consistent with the forward pass).
    n_mel = 16
    sample_rate = 16000
    n_fft = 64
    f_min = 1
    f_max = sample_rate // 2
    n_freqs = n_fft // 2 + 1          # 33
    T = 16                            # number of time frames

    key = jax.random.PRNGKey(0)
    k_spec, k_logit = jax.random.split(key)

    # Deterministic parameter init (matches __init__: base_fb = fbanks.T, logit ~ rand * 0.01).
    base_fb = melscale_fbanks(n_freqs, f_min, f_max, n_mel, sample_rate).T  # (n_mel, n_freqs)
    base_fb = base_fb.astype(jnp.float32)
    logit_weights = (
        jax.random.uniform(k_logit, (n_mel, n_freqs), dtype=jnp.float32) * 0.01
    )

    # Example input spectrogram: (T, n_freqs), non-negative like a power spectrogram.
    spectrogram = jax.random.uniform(k_spec, (T, n_freqs), dtype=jnp.float32)

    out = learnable_mel_filter(spectrogram, base_fb, logit_weights)
    out = jax.block_until_ready(out)

    ref = reference(spectrogram, base_fb, logit_weights)
    assert out.shape == (T, n_mel)
    assert jnp.allclose(out, ref, atol=1e-5, rtol=1e-5), "mismatch vs reference"

    print("KERNEL_OK")
</pallas_src>

<mosaic_0001>
module attributes {stable_mosaic.version = 11 : i64} {
  func.func @weight_prep_kernel(%arg0: memref<33x16xf32, #tpu.memory_space<vmem>>, %arg1: memref<33x16xf32, #tpu.memory_space<vmem>>, %arg2: memref<33x16xf32, #tpu.memory_space<vmem>>) attributes {dimension_semantics = [], scalar_prefetch = 0 : i64, scratch_operands = 0 : i64, tpu.core_type = #tpu.core_type<tc>} {
    %c0 = arith.constant 0 : index
    %c0_0 = arith.constant 0 : index
    %0 = vector.load %arg1[%c0, %c0_0] : memref<33x16xf32, #tpu.memory_space<vmem>>, vector<33x16xf32>
    %cst = arith.constant 0.000000e+00 : f32
    %1 = vector.broadcast %cst : f32 to vector<33x16xf32>
    %2 = arith.maximumf %0, %1 : vector<33x16xf32>
    %3 = math.absf %0 : vector<33x16xf32>
    %cst_1 = arith.constant 0.000000e+00 : f32
    %4 = vector.broadcast %cst_1 : f32 to vector<33x16xf32>
    %5 = arith.subf %4, %3 : vector<33x16xf32>
    %6 = math.exp %5 : vector<33x16xf32>
    %7 = math.log1p %6 : vector<33x16xf32>
    %8 = arith.addf %2, %7 : vector<33x16xf32>
    %c0_2 = arith.constant 0 : index
    %c0_3 = arith.constant 0 : index
    %9 = vector.load %arg0[%c0_2, %c0_3] : memref<33x16xf32, #tpu.memory_space<vmem>>, vector<33x16xf32>
    %10 = arith.mulf %9, %8 : vector<33x16xf32>
    %c0_4 = arith.constant 0 : index
    %c0_5 = arith.constant 0 : index
    %11 = vector.load %arg2[%c0_4, %c0_5] : memref<33x16xf32, #tpu.memory_space<vmem>>, vector<33x16xf32>
    tpu.vector_store %arg2[%c0_4, %c0_5], %10 {strides = array<i32>} : memref<33x16xf32, #tpu.memory_space<vmem>>, vector<33x16xf32>,
    return
  }
}

</mosaic_0001>

<llo_original>
// kernel: tpu_custom_call.1
$region0: #{tpu_custom_call.1}
  #allocation0 [shape = 'u32[]', space=smem, size = 0x4, offset = 0x4, fixed_abs, tag = 'smem constant byte address 0x4 - core index']
  #allocation1 [shape = 'u32[144,128]{1,0:T(1,128)}', space=vmem, size = 0x12000, scoped, tag = 'internal scratch']
  %s0 = inlined_call_operand.vmem [shape: f32[33,16], index: 0, kind: input, shape index: {}]
  %s1 = inlined_call_operand.vmem [shape: f32[33,16], index: 1, kind: input, shape index: {}]
  %s2 = inlined_call_operand.vmem [shape: f32[33,16], index: 2, kind: output, shape index: {}]
  %s3 = sld [smem:[#allocation0]]
  $region18: #{tpu_custom_call.1} parent=0
    _
  %s5 = ssub.s32 1, %s3
  %s6 = scalar_select 0, %s5, %s3
  // Predicated region
  $region2: #{tpu_custom_call.1} parent=0 // pred_check
    _
  $region3: #{tpu_custom_call.1} parent=0 // pred_check_branch
    %8 = sbr.rel (0) target = $region5
  $region4: #{tpu_custom_call.1} parent=0 // pred_region
    _
  $region5: #{tpu_custom_call.1} parent=0 // pred_fallthru
    _
  // Predicated region
  $region6: #{tpu_custom_call.1} parent=0 // pred_check
    _
  $region7: #{tpu_custom_call.1} parent=0 // pred_check_branch
    %10 = sbr.rel (0) target = $region9
  $region8: #{tpu_custom_call.1} parent=0 // pred_region
    _
  $region9: #{tpu_custom_call.1} parent=0 // pred_fallthru
    _
  %v11 = vld [vmem:[%s1] sm:$0xff]
  %v12 = vld [vmem:[%s1 + $0x8] sm:$0xff]
  %v13 = vld [vmem:[%s1 + $0x10] sm:$0xff]
  %v14 = vld [vmem:[%s1 + $0x18] sm:$0xff]
  %v15 = vld [vmem:[%s1 + $0x20] sm:$0x1]
  %v16 = vmax.f32 %v11, 0.0
  %v17 = vmax.f32 %v12, 0.0
  %v18 = vmax.f32 %v13, 0.0
  %v19 = vmax.f32 %v14, 0.0
  %v20 = vmax.f32 %v15, 0.0
  %v21 = vand.u32 2147483647, %v11
  %v22 = vand.u32 2147483647, %v12
  %v23 = vand.u32 2147483647, %v13
  %v24 = vand.u32 2147483647, %v14
  %v25 = vand.u32 2147483647, %v15
  %v26 = vsub.f32 0.0, %v21
  %v27 = vsub.f32 0.0, %v22
  %v28 = vsub.f32 0.0, %v23
  %v29 = vsub.f32 0.0, %v24
  %v30 = vsub.f32 0.0, %v25
  %v31 = vmul.f32 %v26, 1.442695
  %v32 = vpow.pop %v31
  %v33 = vmul.f32 %v27, 1.442695
  %v34 = vpow.pop %v33
  %v35 = vmul.f32 %v28, 1.442695
  %v36 = vpow.pop %v35
  %v37 = vmul.f32 %v29, 1.442695
  %v38 = vpow.pop %v37
  %v39 = vmul.f32 %v30, 1.442695
  %v40 = vpow.pop %v39
  %v41 = vadd.f32 %v32, 1.0
  %v42 = vlog2.pop %v41
  %v43 = vmul.f32 %v42, 0.6931472
  %v44 = vmul.f32 -0.5, %v32
  %v45 = vadd.f32 %v44, 1.0
  %v46 = vmul.f32 %v45, %v32
  %v47 = vand.u32 2147483647, %v32
  %vm48 = vcmp.lt.f32.partialorder %v47, 0.0004427343
  %v49 = vsel %vm48, %v46, %v43
  %v50 = vadd.f32 %v34, 1.0
  %v51 = vlog2.pop %v50
  %v52 = vmul.f32 %v51, 0.6931472
  %v53 = vmul.f32 -0.5, %v34
  %v54 = vadd.f32 %v53, 1.0
  %v55 = vmul.f32 %v54, %v34
  %v56 = vand.u32 2147483647, %v34
  %vm57 = vcmp.lt.f32.partialorder %v56, 0.0004427343
  %v58 = vsel %vm57, %v55, %v52
  %v59 = vadd.f32 %v36, 1.0
  %v60 = vlog2.pop %v59
  %v61 = vmul.f32 %v60, 0.6931472
  %v62 = vmul.f32 -0.5, %v36
  %v63 = vadd.f32 %v62, 1.0
  %v64 = vmul.f32 %v63, %v36
  %v65 = vand.u32 2147483647, %v36
  %vm66 = vcmp.lt.f32.partialorder %v65, 0.0004427343
  %v67 = vsel %vm66, %v64, %v61
  %v68 = vadd.f32 %v38, 1.0
  %v69 = vlog2.pop %v68
  %v70 = vmul.f32 %v69, 0.6931472
  %v71 = vmul.f32 -0.5, %v38
  %v72 = vadd.f32 %v71, 1.0
  %v73 = vmul.f32 %v72, %v38
  %v74 = vand.u32 2147483647, %v38
  %vm75 = vcmp.lt.f32.partialorder %v74, 0.0004427343
  %v76 = vsel %vm75, %v73, %v70
  %v77 = vadd.f32 %v40, 1.0
  %v78 = vlog2.pop %v77
  %v79 = vmul.f32 %v78, 0.6931472
  %v80 = vmul.f32 -0.5, %v40
  %v81 = vadd.f32 %v80, 1.0
  %v82 = vmul.f32 %v81, %v40
  %v83 = vand.u32 2147483647, %v40
  %vm84 = vcmp.lt.f32.partialorder %v83, 0.0004427343
  %v85 = vsel %vm84, %v82, %v79
  %v86 = vadd.f32 %v16, %v49
  %v87 = vadd.f32 %v17, %v58
  %v88 = vadd.f32 %v18, %v67
  %v89 = vadd.f32 %v19, %v76
  %v90 = vadd.f32 %v20, %v85
  %v91 = vld [vmem:[%s0] sm:$0xff]
  %v92 = vld [vmem:[%s0 + $0x8] sm:$0xff]
  %v93 = vld [vmem:[%s0 + $0x10] sm:$0xff]
  %v94 = vld [vmem:[%s0 + $0x18] sm:$0xff]
  %v95 = vld [vmem:[%s0 + $0x20] sm:$0x1]
  %v96 = vmul.f32 %v91, %v86
  %v97 = vmul.f32 %v92, %v87
  %v98 = vmul.f32 %v93, %v88
  %v99 = vmul.f32 %v94, %v89
  %v100 = vmul.f32 %v95, %v90
  %vm101 = vcmask 130048
  %102 = vst.msk [vmem:[%s2] sm:$0xff] %vm101, %v96
  %103 = vst.msk [vmem:[%s2 + $0x8] sm:$0xff] %vm101, %v97
  %104 = vst.msk [vmem:[%s2 + $0x10] sm:$0xff] %vm101, %v98
  %105 = vst.msk [vmem:[%s2 + $0x18] sm:$0xff] %vm101, %v99
  %vm106 = vcmask 122880
  %107 = vst.msk [vmem:[%s2 + $0x20] sm:$0x1] %vm106, %v100
  // Predicated region
  $region10: #{tpu_custom_call.1} parent=0 // pred_check
    _
  $region11: #{tpu_custom_call.1} parent=0 // pred_check_branch
    %109 = sbr.rel (0) target = $region13
  $region12: #{tpu_custom_call.1} parent=0 // pred_region
    _
  $region13: #{tpu_custom_call.1} parent=0 // pred_fallthru
    _
  // Predicated region
  $region14: #{tpu_custom_call.1} parent=0 // pred_check
    _
  $region15: #{tpu_custom_call.1} parent=0 // pred_check_branch
    %111 = sbr.rel (0) target = $region17
  $region16: #{tpu_custom_call.1} parent=0 // pred_region
    _
  $region17: #{tpu_custom_call.1} parent=0 // pred_fallthru
    _

</llo_original>
